<compile_context>
chip_gen: v5e
topology: v5e:2x2
jax: 0.10.0
libtpu: 0.0.40
codegen_flags: <defaults>
</compile_context>

<pallas_src>
import math

import jax
import jax.numpy as jnp
from jax.experimental import pallas as pl
from jax.experimental.pallas import tpu as pltpu


# ----------------------------- helpers ------------------------------------


def _round_up(x, m):
    return ((x + m - 1) // m) * m


def _sublane(dtype):
    # native sublane tile per element width (f32: 8, bf16: 16, int8/fp8: 32)
    return {4: 8, 2: 16, 1: 32}[jnp.dtype(dtype).itemsize]


def _vmem_block_bytes(shape, dtype):
    """VMEM bytes of a block after (sublane, 128)-lane padding of minor dims."""
    shape = tuple(shape)
    if len(shape) == 1:
        shape = (1,) + shape
    *lead, s, l = shape
    per = jnp.dtype(dtype).itemsize
    lead_prod = math.prod(lead) if lead else 1
    return lead_prod * _round_up(s, _sublane(dtype)) * _round_up(l, 128) * per


def _vmem_limits():
    """(compiler vmem_limit_bytes or None, tile byte budget) for this TPU gen."""
    try:
        phys = int(pltpu.get_tpu_info().vmem_capacity_bytes)
    except Exception:
        # Unknown generation / query unavailable: keep the default scoped
        # limit and budget tiles conservatively.
        return None, 24 * 1024 * 1024
    if phys >= 128 * 1024 * 1024:        # v5e / v6e (128 MiB physical VMEM)
        limit = 96 * 1024 * 1024
    elif phys >= 64 * 1024 * 1024:       # v7x (64 MiB per TensorCore)
        limit = 48 * 1024 * 1024
    else:                                # older / smaller parts
        limit = max(16 * 1024 * 1024, phys * 3 // 4)
    return limit, max(8 * 1024 * 1024, limit - 8 * 1024 * 1024)


def _choose_tb(B, P, n1, n2, O, in_dtype, out_dtype, *, target_rows, vmem_budget):
    """Pick a batch tile: ~target_rows MXU rows per step, real-VMEM checked."""
    step = _sublane(in_dtype)  # tb multiple of this keeps every block aligned

    def footprint(tb):
        x1 = _vmem_block_bytes((tb * P, n1), in_dtype)      # n1 lane-padded to 128
        x2 = _vmem_block_bytes((tb, n2), in_dtype)
        out = _vmem_block_bytes((tb, P, O), out_dtype)
        w1 = _vmem_block_bytes((n1, O), in_dtype)
        w2 = _vmem_block_bytes((n2, O), in_dtype)
        bia = _vmem_block_bytes((1, O), jnp.float32)
        # double-buffer everything (conservative for the grid-invariant bits)
        return 2 * (x1 + x2 + out + w1 + w2 + bia)

    tb = max(step, (target_rows // max(P, 1)) // step * step)
    while tb > step and footprint(tb) > vmem_budget:
        tb = max(step, (tb // 2) // step * step)

    if tb >= B:
        # Single block: every BlockSpec dim equals the full array dim, so no
        # alignment constraints and no OOB masking needed.
        tb = B
        # v7x megacore: keep >= 2 parallel grid blocks when there is enough work.
        if B >= 2 * step and B * P >= 2 * target_rows:
            half = min(B, _round_up(-(-B // 2), step))
            if half < B:
                tb = half
    return tb


# ----------------------------- kernel -------------------------------------


def _linear_with_repeat_kernel(x1_ref, x2_ref, w1_ref, w2_ref, b_ref, o_ref):
    # x1_ref: (tb*P, n1)  points flattened -> one tall MXU matmul
    # x2_ref: (tb, n2), w1_ref: (n1, O), w2_ref: (n2, O), b_ref: (1, O) f32
    # o_ref : (tb, P, O)
    tb, P, O = o_ref.shape
    # Main matmul, f32 accumulation on the MXU.
    out1 = jnp.dot(x1_ref[...], w1_ref[...], preferred_element_type=jnp.float32)
    # Small per-batch "repeat" branch + bias, done in-kernel to avoid an HBM
    # round-trip of a (B, O) f32 intermediate (MXU has plenty of slack).
    out2 = jnp.dot(x2_ref[...], w2_ref[...], preferred_element_type=jnp.float32)
    out2 = out2 + b_ref[...]                       # (tb, O) + (1, O), f32
    res = out1.reshape(tb, P, O) + out2[:, None, :]  # f32 epilogue (v5e-safe)
    o_ref[...] = res.astype(o_ref.dtype)


# ----------------------------- wrapper ------------------------------------


def linear_with_repeat(x1, x2, weight, bias=None, *, compute_dtype=None,
                       tb=None, target_rows=8192):
    """LinearWithRepeat forward.

    x1: (..., P, n1), x2: (..., n2), weight: (O, n1+n2), bias: (O,) or None.
    compute_dtype: dtype for x1/x2/weights and the output (pass jnp.bfloat16
      to halve HBM traffic on this memory-bound kernel); the in-kernel
      accumulation is always f32.
    """
    out_features, in_features = weight.shape
    n1 = x1.shape[-1]
    n2 = x2.shape[-1]
    assert n1 + n2 == in_features
    P = x1.shape[-2]
    lead = tuple(x1.shape[:-2])
    assert tuple(x2.shape[:-1]) == lead

    cdt = jnp.dtype(compute_dtype) if compute_dtype is not None else jnp.dtype(x1.dtype)
    B = math.prod(lead) if lead else 1

    # Cheap XLA-side layout prep (contiguous reshapes + transposes + casts).
    x1f = x1.reshape(B * P, n1).astype(cdt)          # flattened points
    x2f = x2.reshape(B, n2).astype(cdt)
    w1 = jnp.transpose(weight[:, :n1]).astype(cdt)   # (n1, O)
    w2 = jnp.transpose(weight[:, n1:]).astype(cdt)   # (n2, O)
    if bias is None:
        b = jnp.zeros((1, out_features), jnp.float32)
    else:
        b = bias.astype(jnp.float32).reshape(1, out_features)

    vmem_limit, vmem_budget = _vmem_limits()
    step = _sublane(cdt)
    if tb is None:
        tb = _choose_tb(B, P, n1, n2, out_features, cdt, cdt,
                        target_rows=target_rows, vmem_budget=vmem_budget)
    else:
        tb = int(tb)
        tb = B if tb >= B else max(step, (tb // step) * step)

    n_blocks = pl.cdiv(B, tb)
    # No batch padding / output slicing: a ragged last block is handled by
    # Pallas OOB masking (unused garbage input rows, dropped OOB output rows).

    out = pl.pallas_call(
        _linear_with_repeat_kernel,
        out_shape=jax.ShapeDtypeStruct((B, P, out_features), cdt),
        grid_spec=pltpu.PrefetchScalarGridSpec(
            num_scalar_prefetch=0,
            grid=(n_blocks,),
            in_specs=[
                pl.BlockSpec((tb * P, n1), lambda i: (i, 0)),
                pl.BlockSpec((tb, n2), lambda i: (i, 0)),
                pl.BlockSpec((n1, out_features), lambda i: (0, 0)),
                pl.BlockSpec((n2, out_features), lambda i: (0, 0)),
                pl.BlockSpec((1, out_features), lambda i: (0, 0)),
            ],
            out_specs=pl.BlockSpec((tb, P, out_features), lambda i: (i, 0, 0)),
        ),
        compiler_params=pltpu.CompilerParams(
            dimension_semantics=("parallel",),
            vmem_limit_bytes=vmem_limit,
        ),
    )(x1f, x2f, w1, w2, b)

    return out.reshape(*lead, P, out_features)


# ----------------------------- reference / demo ----------------------------


def init_params(key, in_features, out_features, dtype=jnp.float32):
    """Deterministic re-implementation of torch.nn.Linear reset_parameters."""
    kw, kb = jax.random.split(key)
    bound = 1.0 / jnp.sqrt(in_features)
    weight = jax.random.uniform(
        kw, (out_features, in_features), dtype, minval=-bound, maxval=bound)
    bias = jax.random.uniform(
        kb, (out_features,), dtype, minval=-bound, maxval=bound)
    return weight, bias


def reference(x1, x2, weight, bias):
    n1 = x1.shape[-1]
    out1 = jnp.einsum("...pn,on->...po", x1, weight[:, :n1]) + bias
    out2 = jnp.einsum("...n,on->...o", x2, weight[:, n1:])
    return out1 + out2[..., None, :]


if __name__ == "__main__":
    # small NeRF-like shapes: batch=2, rays=8 (flattened B=16), points=16,
    # point-feature n1=32, direction-feature n2=32, out_features=128.
    B0, R, P = 2, 8, 16
    n1, n2, out_features = 32, 32, 128
    in_features = n1 + n2

    key = jax.random.PRNGKey(0)
    k1, k2, kp = jax.random.split(key, 3)
    x1 = jax.random.normal(k1, (B0, R, P, n1), jnp.float32)
    x2 = jax.random.normal(k2, (B0, R, n2), jnp.float32)
    weight, bias = init_params(kp, in_features, out_features)

    ref = reference(x1, x2, weight, bias)

    # f32 mode: tight check against the f32 reference.
    out_f32 = jax.block_until_ready(linear_with_repeat(x1, x2, weight, bias))
    assert out_f32.shape == (B0, R, P, out_features)
    assert out_f32.dtype == jnp.float32
    assert jnp.allclose(out_f32, ref, atol=1e-4, rtol=1e-4), "f32 mismatch vs reference"

    # bf16 mode: halves x1-read / output-write HBM bytes; f32 accumulation.
    out_bf16 = jax.block_until_ready(
        linear_with_repeat(x1, x2, weight, bias, compute_dtype=jnp.bfloat16))
    assert out_bf16.shape == (B0, R, P, out_features)
    assert out_bf16.dtype == jnp.bfloat16
    assert jnp.allclose(out_bf16.astype(jnp.float32), ref, atol=5e-2, rtol=5e-2), \
        "bf16 mismatch vs reference"

    print("KERNEL_OK")
</pallas_src>

<mosaic_0001>
module attributes {stable_mosaic.version = 11 : i64} {
  func.func @_linear_with_repeat_kernel(%arg0: i32, %arg1: memref<256x32xf32, #tpu.memory_space<vmem>>, %arg2: memref<16x32xf32, #tpu.memory_space<vmem>>, %arg3: memref<32x128xf32, #tpu.memory_space<vmem>>, %arg4: memref<32x128xf32, #tpu.memory_space<vmem>>, %arg5: memref<1x128xf32, #tpu.memory_space<vmem>>, %arg6: memref<16x16x128xf32, #tpu.memory_space<vmem>>) attributes {dimension_semantics = [#tpu.dimension_semantics<parallel>], iteration_bounds = array<i64: 1>, scalar_prefetch = 0 : i64, scratch_operands = 0 : i64, tpu.core_type = #tpu.core_type<tc>, window_params = [{transform_indices = @transform_0, window_bounds = array<i64: 256, 32>}, {transform_indices = @transform_1, window_bounds = array<i64: 16, 32>}, {pipeline_mode = #tpu.pipeline_mode<synchronous>, transform_indices = @transform_2, window_bounds = array<i64: 32, 128>}, {pipeline_mode = #tpu.pipeline_mode<synchronous>, transform_indices = @transform_3, window_bounds = array<i64: 32, 128>}, {pipeline_mode = #tpu.pipeline_mode<synchronous>, transform_indices = @transform_4, window_bounds = array<i64: 1, 128>}, {transform_indices = @transform_5, window_bounds = array<i64: 16, 16, 128>}]} {
    %c0 = arith.constant 0 : index
    %c0_0 = arith.constant 0 : index
    %0 = vector.load %arg1[%c0, %c0_0] : memref<256x32xf32, #tpu.memory_space<vmem>>, vector<256x32xf32>
    %c0_1 = arith.constant 0 : index
    %c0_2 = arith.constant 0 : index
    %1 = vector.load %arg3[%c0_1, %c0_2] : memref<32x128xf32, #tpu.memory_space<vmem>>, vector<32x128xf32>
    %cst = arith.constant dense<0.000000e+00> : vector<256x128xf32>
    %2 = tpu.matmul %0, %1, %cst {dimension_numbers = #tpu.dot_dimension_numbers<[1], [0], [0], [1], [0, 0, 1, 1], [], []>} : vector<256x32xf32>, vector<32x128xf32>, vector<256x128xf32> -> vector<256x128xf32>
    %c0_3 = arith.constant 0 : index
    %c0_4 = arith.constant 0 : index
    %3 = vector.load %arg2[%c0_3, %c0_4] : memref<16x32xf32, #tpu.memory_space<vmem>>, vector<16x32xf32>
    %c0_5 = arith.constant 0 : index
    %c0_6 = arith.constant 0 : index
    %4 = vector.load %arg4[%c0_5, %c0_6] : memref<32x128xf32, #tpu.memory_space<vmem>>, vector<32x128xf32>
    %cst_7 = arith.constant dense<0.000000e+00> : vector<16x128xf32>
    %5 = tpu.matmul %3, %4, %cst_7 {dimension_numbers = #tpu.dot_dimension_numbers<[1], [0], [0], [1], [0, 0, 1, 1], [], []>} : vector<16x32xf32>, vector<32x128xf32>, vector<16x128xf32> -> vector<16x128xf32>
    %c0_8 = arith.constant 0 : index
    %c0_9 = arith.constant 0 : index
    %6 = vector.load %arg5[%c0_8, %c0_9] : memref<1x128xf32, #tpu.memory_space<vmem>>, vector<1x128xf32>
    %7 = vector.broadcast %6 : vector<1x128xf32> to vector<16x128xf32>
    %8 = arith.addf %5, %7 : vector<16x128xf32>
    %9 = vector.shape_cast %2 : vector<256x128xf32> to vector<16x16x128xf32>
    %10 = vector.shape_cast %8 : vector<16x128xf32> to vector<16x1x128xf32>
    %11 = vector.broadcast %10 : vector<16x1x128xf32> to vector<16x16x128xf32>
    %12 = arith.addf %9, %11 : vector<16x16x128xf32>
    %c0_10 = arith.constant 0 : index
    %c0_11 = arith.constant 0 : index
    %c0_12 = arith.constant 0 : index
    %13 = vector.load %arg6[%c0_10, %c0_11, %c0_12] : memref<16x16x128xf32, #tpu.memory_space<vmem>>, vector<16x16x128xf32>
    tpu.vector_store %arg6[%c0_10, %c0_11, %c0_12], %12 {strides = array<i32>} : memref<16x16x128xf32, #tpu.memory_space<vmem>>, vector<16x16x128xf32>,
    return
  }
  func.func @transform_0(%arg0: i32) -> (i32, i32) {
    %c0_i32 = arith.constant 0 : i32
    %c0_i32_0 = arith.constant 0 : i32
    return %arg0, %c0_i32 : i32, i32
  }
  func.func @transform_1(%arg0: i32) -> (i32, i32) {
    %c0_i32 = arith.constant 0 : i32
    %c0_i32_0 = arith.constant 0 : i32
    return %arg0, %c0_i32 : i32, i32
  }
  func.func @transform_2(%arg0: i32) -> (i32, i32) {
    %c0_i32 = arith.constant 0 : i32
    %c0_i32_0 = arith.constant 0 : i32
    %c0_i32_1 = arith.constant 0 : i32
    return %c0_i32, %c0_i32_0 : i32, i32
  }
  func.func @transform_3(%arg0: i32) -> (i32, i32) {
    %c0_i32 = arith.constant 0 : i32
    %c0_i32_0 = arith.constant 0 : i32
    %c0_i32_1 = arith.constant 0 : i32
    return %c0_i32, %c0_i32_0 : i32, i32
  }
  func.func @transform_4(%arg0: i32) -> (i32, i32) {
    %c0_i32 = arith.constant 0 : i32
    %c0_i32_0 = arith.constant 0 : i32
    %c0_i32_1 = arith.constant 0 : i32
    return %c0_i32, %c0_i32_0 : i32, i32
  }
  func.func @transform_5(%arg0: i32) -> (i32, i32, i32) {
    %c0_i32 = arith.constant 0 : i32
    %c0_i32_0 = arith.constant 0 : i32
    %c0_i32_1 = arith.constant 0 : i32
    return %arg0, %c0_i32, %c0_i32_0 : i32, i32, i32
  }
}

</mosaic_0001>

<llo_original>
// kernel: tpu_custom_call.1
$region0: #{tpu_custom_call.1}
  #allocation0 [shape = 'u32[]', space=smem, size = 0x4, offset = 0x4, fixed_abs, tag = 'smem constant byte address 0x4 - core index']
  #allocation1 [shape = 'u32[72,128]{1,0:T(1,128)}', space=vmem, size = 0x9000, scoped, tag = 'internal scratch']
  %s0 = inlined_call_operand.vmem [shape: f32[256,32], index: 0, kind: input, shape index: {}]
  %s1 = inlined_call_operand.vmem [shape: f32[16,32], index: 1, kind: input, shape index: {}]
  %s2 = inlined_call_operand.vmem [shape: f32[32,128], index: 2, kind: input, shape index: {}]
  %s3 = inlined_call_operand.vmem [shape: f32[32,128], index: 3, kind: input, shape index: {}]
  %s4 = inlined_call_operand.vmem [shape: f32[1,128], index: 4, kind: input, shape index: {}]
  %s5 = inlined_call_operand.hbm [shape: f32[16,16,128], index: 5, kind: output, shape index: {}]
  %s6 = sld [smem:[#allocation0]]
  $region30: #{tpu_custom_call.1} parent=0
    _
  %s8 = ssub.s32 1, %s6
  %s9 = scalar_select 0, %s8, %s6
  $region1: #{tpu_custom_call.1} parent=0
    #allocation2 [shape = 'u8[131072]{0}', space=vmem, size = 0x20000, scoped, tag = 'output window, operand 0, single buffered']
    #allocation3 [shape = 's32[1]{0}', space=sflag, size = 0x4, scoped, tag = 'scoped memory for tpu_custom_call.1']
    %10 = vsyncpa [#allocation3], 0
    // Predicated region
    $region2: #{tpu_custom_call.1} parent=1 // pred_check
      _
    $region3: #{tpu_custom_call.1} parent=1 // pred_check_branch
      %12 = sbr.rel (0) target = $region5
    $region4: #{tpu_custom_call.1} parent=1 // pred_region
      _
    $region5: #{tpu_custom_call.1} parent=1 // pred_fallthru
      _
    // Predicated region
    $region6: #{tpu_custom_call.1} parent=1 // pred_check
      _
    $region7: #{tpu_custom_call.1} parent=1 // pred_check_branch
      %14 = sbr.rel (0) target = $region9
    $region8: #{tpu_custom_call.1} parent=1 // pred_region
      _
    $region9: #{tpu_custom_call.1} parent=1 // pred_fallthru
      _
    // Predicated region
    $region10: #{tpu_custom_call.1} parent=1 // pred_check
      _
    $region11: #{tpu_custom_call.1} parent=1 // pred_check_branch
      %16 = sbr.rel (0) target = $region13
    $region12: #{tpu_custom_call.1} parent=1 // pred_region
      _
    $region13: #{tpu_custom_call.1} parent=1 // pred_fallthru
      _
    // Predicated region
    $region14: #{tpu_custom_call.1} parent=1 // pred_check
      _
    $region15: #{tpu_custom_call.1} parent=1 // pred_check_branch
      %18 = sbr.rel (0) target = $region17
    $region16: #{tpu_custom_call.1} parent=1 // pred_region
      _
    $region17: #{tpu_custom_call.1} parent=1 // pred_fallthru
      _
    // Predicated region
    $region18: #{tpu_custom_call.1} parent=1 // pred_check
      _
    $region19: #{tpu_custom_call.1} parent=1 // pred_check_branch
      %20 = sbr.rel (0) target = $region21
    $region20: #{tpu_custom_call.1} parent=1 // pred_region
      _
    $region21: #{tpu_custom_call.1} parent=1 // pred_fallthru
      _
    %v21 = vld [vmem:[%s0] sm:$0xff]
    %v22 = vld [vmem:[%s0 + $0x8] sm:$0xff]
    %v23 = vld [vmem:[%s0 + $0x10] sm:$0xff]
    %v24 = vld [vmem:[%s0 + $0x18] sm:$0xff]
    %v25 = vld [vmem:[%s0 + $0x20] sm:$0xff]
    %v26 = vld [vmem:[%s0 + $0x28] sm:$0xff]
    %v27 = vld [vmem:[%s0 + $0x30] sm:$0xff]
    %v28 = vld [vmem:[%s0 + $0x38] sm:$0xff]
    %v29 = vld [vmem:[%s0 + $0x40] sm:$0xff]
    %v30 = vld [vmem:[%s0 + $0x48] sm:$0xff]
    %v31 = vld [vmem:[%s0 + $0x50] sm:$0xff]
    %v32 = vld [vmem:[%s0 + $0x58] sm:$0xff]
    %v33 = vld [vmem:[%s0 + $0x60] sm:$0xff]
    %v34 = vld [vmem:[%s0 + $0x68] sm:$0xff]
    %v35 = vld [vmem:[%s0 + $0x70] sm:$0xff]
    %v36 = vld [vmem:[%s0 + $0x78] sm:$0xff]
    %v37 = vld [vmem:[%s0 + $0x80] sm:$0xff]
    %v38 = vld [vmem:[%s0 + $0x88] sm:$0xff]
    %v39 = vld [vmem:[%s0 + $0x90] sm:$0xff]
    %v40 = vld [vmem:[%s0 + $0x98] sm:$0xff]
    %v41 = vld [vmem:[%s0 + $0xa0] sm:$0xff]
    %v42 = vld [vmem:[%s0 + $0xa8] sm:$0xff]
    %v43 = vld [vmem:[%s0 + $0xb0] sm:$0xff]
    %v44 = vld [vmem:[%s0 + $0xb8] sm:$0xff]
    %v45 = vld [vmem:[%s0 + $0xc0] sm:$0xff]
    %v46 = vld [vmem:[%s0 + $0xc8] sm:$0xff]
    %v47 = vld [vmem:[%s0 + $0xd0] sm:$0xff]
    %v48 = vld [vmem:[%s0 + $0xd8] sm:$0xff]
    %v49 = vld [vmem:[%s0 + $0xe0] sm:$0xff]
    %v50 = vld [vmem:[%s0 + $0xe8] sm:$0xff]
    %v51 = vld [vmem:[%s0 + $0xf0] sm:$0xff]
    %v52 = vld [vmem:[%s0 + $0xf8] sm:$0xff]
    %v53 = vld [vmem:[%s2] sm:$0xff]
    %v54 = vld [vmem:[%s2 + $0x8] sm:$0xff]
    %v55 = vld [vmem:[%s2 + $0x10] sm:$0xff]
    %v56 = vld [vmem:[%s2 + $0x18] sm:$0xff]
    %vm57 = vcmask 261120
    %v59 = vsel %vm57, %v21, 0
    %v62 = vsel %vm57, %v22, 0
    %v65 = vsel %vm57, %v23, 0
    %v68 = vsel %vm57, %v24, 0
    %v71 = vsel %vm57, %v25, 0
    %v74 = vsel %vm57, %v26, 0
    %v77 = vsel %vm57, %v27, 0
    %v80 = vsel %vm57, %v28, 0
    %v83 = vsel %vm57, %v29, 0
    %v86 = vsel %vm57, %v30, 0
    %v89 = vsel %vm57, %v31, 0
    %v92 = vsel %vm57, %v32, 0
    %v95 = vsel %vm57, %v33, 0
    %v98 = vsel %vm57, %v34, 0
    %v101 = vsel %vm57, %v35, 0
    %v104 = vsel %vm57, %v36, 0
    %v107 = vsel %vm57, %v37, 0
    %v110 = vsel %vm57, %v38, 0
    %v113 = vsel %vm57, %v39, 0
    %v116 = vsel %vm57, %v40, 0
    %v119 = vsel %vm57, %v41, 0
    %v122 = vsel %vm57, %v42, 0
    %v125 = vsel %vm57, %v43, 0
    %v128 = vsel %vm57, %v44, 0
    %v131 = vsel %vm57, %v45, 0
    %v134 = vsel %vm57, %v46, 0
    %v137 = vsel %vm57, %v47, 0
    %v140 = vsel %vm57, %v48, 0
    %v143 = vsel %vm57, %v49, 0
    %v146 = vsel %vm57, %v50, 0
    %v149 = vsel %vm57, %v51, 0
    %v152 = vsel %vm57, %v52, 0
    %154 = vmatpush.msra.mxu0 0.0
    %155 = vmatpush.msra.mxu0 0.0
    %156 = vmatpush.msra.mxu0 0.0
    %157 = vmatpush.msra.mxu0 0.0
    %158 = vmatpush.msra.mxu0 0.0
    %159 = vmatpush.msra.mxu0 0.0
    %160 = vmatpush.msra.mxu0 0.0
    %161 = vmatpush.msra.mxu0 0.0
    %162 = vmatpush.msra.mxu0 0.0
    %163 = vmatpush.msra.mxu0 0.0
    %164 = vmatpush.msra.mxu0 0.0
    %165 = vmatpush.msra.mxu0 0.0
    %166 = vmatpush.msra.mxu0 %v56
    %167 = vmatpush.msra.mxu0 %v55
    %168 = vmatpush.msra.mxu0 %v54
    %169 = vmatpush.msra.mxu0 %v53
    %170 = vmatmul.f32.gmra.mxu0 %v59
    %v171 = vpop.f32.mrf.mxu0
    %v172 = vadd.f32 0.0, %v171
    %173 = vmatmul.f32.gmra.mxu0 %v62
    %v174 = vpop.f32.mrf.mxu0
    %v175 = vadd.f32 0.0, %v174
    %176 = vmatmul.f32.gmra.mxu0 %v65
    %v177 = vpop.f32.mrf.mxu0
    %v178 = vadd.f32 0.0, %v177
    %179 = vmatmul.f32.gmra.mxu0 %v68
    %v180 = vpop.f32.mrf.mxu0
    %v181 = vadd.f32 0.0, %v180
    %182 = vmatmul.f32.gmra.mxu0 %v71
    %v183 = vpop.f32.mrf.mxu0
    %v184 = vadd.f32 0.0, %v183
    %185 = vmatmul.f32.gmra.mxu0 %v74
    %v186 = vpop.f32.mrf.mxu0
    %v187 = vadd.f32 0.0, %v186
    %188 = vmatmul.f32.gmra.mxu0 %v77
    %v189 = vpop.f32.mrf.mxu0
    %v190 = vadd.f32 0.0, %v189
    %191 = vmatmul.f32.gmra.mxu0 %v80
    %v192 = vpop.f32.mrf.mxu0
    %v193 = vadd.f32 0.0, %v192
    %194 = vmatmul.f32.gmra.mxu0 %v83
    %v195 = vpop.f32.mrf.mxu0
    %v196 = vadd.f32 0.0, %v195
    %197 = vmatmul.f32.gmra.mxu0 %v86
    %v198 = vpop.f32.mrf.mxu0
    %v199 = vadd.f32 0.0, %v198
    %200 = vmatmul.f32.gmra.mxu0 %v89
    %v201 = vpop.f32.mrf.mxu0
    %v202 = vadd.f32 0.0, %v201
    %203 = vmatmul.f32.gmra.mxu0 %v92
    %v204 = vpop.f32.mrf.mxu0
    %v205 = vadd.f32 0.0, %v204
    %206 = vmatmul.f32.gmra.mxu0 %v95
    %v207 = vpop.f32.mrf.mxu0
    %v208 = vadd.f32 0.0, %v207
    %209 = vmatmul.f32.gmra.mxu0 %v98
    %v210 = vpop.f32.mrf.mxu0
    %v211 = vadd.f32 0.0, %v210
    %212 = vmatmul.f32.gmra.mxu0 %v101
    %v213 = vpop.f32.mrf.mxu0
    %v214 = vadd.f32 0.0, %v213
    %215 = vmatmul.f32.gmra.mxu0 %v104
    %v216 = vpop.f32.mrf.mxu0
    %v217 = vadd.f32 0.0, %v216
    %218 = vmatmul.f32.gmra.mxu0 %v107
    %v219 = vpop.f32.mrf.mxu0
    %v220 = vadd.f32 0.0, %v219
    %221 = vmatmul.f32.gmra.mxu0 %v110
    %v222 = vpop.f32.mrf.mxu0
    %v223 = vadd.f32 0.0, %v222
    %224 = vmatmul.f32.gmra.mxu0 %v113
    %v225 = vpop.f32.mrf.mxu0
    %v226 = vadd.f32 0.0, %v225
    %227 = vmatmul.f32.gmra.mxu0 %v116
    %v228 = vpop.f32.mrf.mxu0
    %v229 = vadd.f32 0.0, %v228
    %230 = vmatmul.f32.gmra.mxu0 %v119
    %v231 = vpop.f32.mrf.mxu0
    %v232 = vadd.f32 0.0, %v231
    %233 = vmatmul.f32.gmra.mxu0 %v122
    %v234 = vpop.f32.mrf.mxu0
    %v235 = vadd.f32 0.0, %v234
    %236 = vmatmul.f32.gmra.mxu0 %v125
    %v237 = vpop.f32.mrf.mxu0
    %v238 = vadd.f32 0.0, %v237
    %239 = vmatmul.f32.gmra.mxu0 %v128
    %v240 = vpop.f32.mrf.mxu0
    %v241 = vadd.f32 0.0, %v240
    %242 = vmatmul.f32.gmra.mxu0 %v131
    %v243 = vpop.f32.mrf.mxu0
    %v244 = vadd.f32 0.0, %v243
    %245 = vmatmul.f32.gmra.mxu0 %v134
    %v246 = vpop.f32.mrf.mxu0
    %v247 = vadd.f32 0.0, %v246
    %248 = vmatmul.f32.gmra.mxu0 %v137
    %v249 = vpop.f32.mrf.mxu0
    %v250 = vadd.f32 0.0, %v249
    %251 = vmatmul.f32.gmra.mxu0 %v140
    %v252 = vpop.f32.mrf.mxu0
    %v253 = vadd.f32 0.0, %v252
    %254 = vmatmul.f32.gmra.mxu0 %v143
    %v255 = vpop.f32.mrf.mxu0
    %v256 = vadd.f32 0.0, %v255
    %257 = vmatmul.f32.gmra.mxu0 %v146
    %v258 = vpop.f32.mrf.mxu0
    %v259 = vadd.f32 0.0, %v258
    %260 = vmatmul.f32.gmra.mxu0 %v149
    %v261 = vpop.f32.mrf.mxu0
    %v262 = vadd.f32 0.0, %v261
    %263 = vmatmul.f32.gmra.mxu0 %v152
    %v264 = vpop.f32.mrf.mxu0
    %v265 = vadd.f32 0.0, %v264
    %266 = vdwg.mxu0
    %v267 = vld [vmem:[%s1] sm:$0xff]
    %v268 = vld [vmem:[%s1 + $0x8] sm:$0xff]
    %v269 = vld [vmem:[%s3] sm:$0xff]
    %v270 = vld [vmem:[%s3 + $0x8] sm:$0xff]
    %v271 = vld [vmem:[%s3 + $0x10] sm:$0xff]
    %v272 = vld [vmem:[%s3 + $0x18] sm:$0xff]
    %v273 = vld [vmem:[%s4] sm:$0x1]
    %v275 = vperm.slane %v273, 0
    %v278 = vsel %vm57, %v267, 0
    %v281 = vsel %vm57, %v268, 0
    %283 = vmatpush.msra.mxu0 0.0
    %284 = vmatpush.msra.mxu0 0.0
    %285 = vmatpush.msra.mxu0 0.0
    %286 = vmatpush.msra.mxu0 0.0
    %287 = vmatpush.msra.mxu0 0.0
    %288 = vmatpush.msra.mxu0 0.0
    %289 = vmatpush.msra.mxu0 0.0
    %290 = vmatpush.msra.mxu0 0.0
    %291 = vmatpush.msra.mxu0 0.0
    %292 = vmatpush.msra.mxu0 0.0
    %293 = vmatpush.msra.mxu0 0.0
    %294 = vmatpush.msra.mxu0 0.0
    %295 = vmatpush.msra.mxu0 %v272
    %296 = vmatpush.msra.mxu0 %v271
    %297 = vmatpush.msra.mxu0 %v270
    %298 = vmatpush.msra.mxu0 %v269
    %299 = vmatmul.f32.gmra.mxu0 %v278
    %v300 = vpop.f32.mrf.mxu0
    %v301 = vadd.f32 %v275, %v300
    %302 = vmatmul.f32.gmra.mxu0 %v281
    %v303 = vpop.f32.mrf.mxu0
    %v304 = vadd.f32 %v275, %v303
    %305 = vdwg.mxu0
    %v308 = vrot.slane %v301, 1
    %v309 = vrot.slane %v301, 2
    %v310 = vrot.slane %v301, 3
    %v311 = vrot.slane %v301, 4
    %v312 = vrot.slane %v301, 5
    %v313 = vrot.slane %v301, 6
    %v314 = vrot.slane %v301, 7
    %v315 = vrot.slane %v304, 1
    %v316 = vrot.slane %v304, 2
    %v317 = vrot.slane %v304, 3
    %v318 = vrot.slane %v304, 4
    %v319 = vrot.slane %v304, 5
    %v320 = vrot.slane %v304, 6
    %v321 = vrot.slane %v304, 7
    %v322 = vperm.slane %v301, 0
    %v323 = vperm.slane %v308, 0
    %v324 = vperm.slane %v309, 0
    %v325 = vperm.slane %v310, 0
    %v326 = vperm.slane %v311, 0
    %v327 = vperm.slane %v312, 0
    %v328 = vperm.slane %v313, 0
    %v329 = vperm.slane %v314, 0
    %v330 = vperm.slane %v304, 0
    %v331 = vperm.slane %v315, 0
    %v332 = vperm.slane %v316, 0
    %v333 = vperm.slane %v317, 0
    %v334 = vperm.slane %v318, 0
    %v335 = vperm.slane %v319, 0
    %v336 = vperm.slane %v320, 0
    %v337 = vperm.slane %v321, 0
    %v354 = vadd.f32 %v172, %v322
    %v355 = vadd.f32 %v175, %v322
    %v356 = vadd.f32 %v178, %v323
    %v357 = vadd.f32 %v181, %v323
    %v358 = vadd.f32 %v184, %v324
    %v359 = vadd.f32 %v187, %v324
    %v360 = vadd.f32 %v190, %v325
    %v361 = vadd.f32 %v193, %v325
    %v362 = vadd.f32 %v196, %v326
    %v363 = vadd.f32 %v199, %v326
    %v364 = vadd.f32 %v202, %v327
    %v365 = vadd.f32 %v205, %v327
    %v366 = vadd.f32 %v208, %v328
    %v367 = vadd.f32 %v211, %v328
    %v368 = vadd.f32 %v214, %v329
    %v369 = vadd.f32 %v217, %v329
    %v370 = vadd.f32 %v220, %v330
    %v371 = vadd.f32 %v223, %v330
    %v372 = vadd.f32 %v226, %v331
    %v373 = vadd.f32 %v229, %v331
    %v374 = vadd.f32 %v232, %v332
    %v375 = vadd.f32 %v235, %v332
    %v376 = vadd.f32 %v238, %v333
    %v377 = vadd.f32 %v241, %v333
    %v378 = vadd.f32 %v244, %v334
    %v379 = vadd.f32 %v247, %v334
    %v380 = vadd.f32 %v250, %v335
    %v381 = vadd.f32 %v253, %v335
    %v382 = vadd.f32 %v256, %v336
    %v383 = vadd.f32 %v259, %v336
    %v384 = vadd.f32 %v262, %v337
    %v385 = vadd.f32 %v265, %v337
    %386 = vst [vmem:[#allocation2] sm:$0xff] %v354
    %387 = vst [vmem:[#allocation2 + $0x8] sm:$0xff] %v355
    %388 = vst [vmem:[#allocation2 + $0x10] sm:$0xff] %v356
    %389 = vst [vmem:[#allocation2 + $0x18] sm:$0xff] %v357
    %390 = vst [vmem:[#allocation2 + $0x20] sm:$0xff] %v358
    %391 = vst [vmem:[#allocation2 + $0x28] sm:$0xff] %v359
    %392 = vst [vmem:[#allocation2 + $0x30] sm:$0xff] %v360
    %393 = vst [vmem:[#allocation2 + $0x38] sm:$0xff] %v361
    %394 = vst [vmem:[#allocation2 + $0x40] sm:$0xff] %v362
    %395 = vst [vmem:[#allocation2 + $0x48] sm:$0xff] %v363
    %396 = vst [vmem:[#allocation2 + $0x50] sm:$0xff] %v364
    %397 = vst [vmem:[#allocation2 + $0x58] sm:$0xff] %v365
    %398 = vst [vmem:[#allocation2 + $0x60] sm:$0xff] %v366
    %399 = vst [vmem:[#allocation2 + $0x68] sm:$0xff] %v367
    %400 = vst [vmem:[#allocation2 + $0x70] sm:$0xff] %v368
    %401 = vst [vmem:[#allocation2 + $0x78] sm:$0xff] %v369
    %402 = vst [vmem:[#allocation2 + $0x80] sm:$0xff] %v370
    %403 = vst [vmem:[#allocation2 + $0x88] sm:$0xff] %v371
    %404 = vst [vmem:[#allocation2 + $0x90] sm:$0xff] %v372
    %405 = vst [vmem:[#allocation2 + $0x98] sm:$0xff] %v373
    %406 = vst [vmem:[#allocation2 + $0xa0] sm:$0xff] %v374
    %407 = vst [vmem:[#allocation2 + $0xa8] sm:$0xff] %v375
    %408 = vst [vmem:[#allocation2 + $0xb0] sm:$0xff] %v376
    %409 = vst [vmem:[#allocation2 + $0xb8] sm:$0xff] %v377
    %410 = vst [vmem:[#allocation2 + $0xc0] sm:$0xff] %v378
    %411 = vst [vmem:[#allocation2 + $0xc8] sm:$0xff] %v379
    %412 = vst [vmem:[#allocation2 + $0xd0] sm:$0xff] %v380
    %413 = vst [vmem:[#allocation2 + $0xd8] sm:$0xff] %v381
    %414 = vst [vmem:[#allocation2 + $0xe0] sm:$0xff] %v382
    %415 = vst [vmem:[#allocation2 + $0xe8] sm:$0xff] %v383
    %416 = vst [vmem:[#allocation2 + $0xf0] sm:$0xff] %v384
    %417 = vst [vmem:[#allocation2 + $0xf8] sm:$0xff] %v385
    // Predicated region
    $region22: #{tpu_custom_call.1} parent=1 // pred_check
      _
    $region23: #{tpu_custom_call.1} parent=1 // pred_check_branch
      %419 = sbr.rel (0) target = $region25
    $region24: #{tpu_custom_call.1} parent=1 // pred_region
      %421 = vsyncadd [#allocation3], 0
      %s422 = sshll.u32 [#allocation2], 4
      %s423 = int_to_ptr.vmem [resolvable:$true] %s422
      %s424 = sshll.u32 %s5, 4
      %s425 = int_to_ptr.hbm [resolvable:$true] %s424
      %430 = dma.vmem_to_hbm [thread:$0]  %s423, 4096, %s425, [#allocation3], 128, 128, 8
    $region25: #{tpu_custom_call.1} parent=1 // pred_fallthru
      _
    // Predicated region
    $region26: #{tpu_custom_call.1} parent=1 // pred_check
      _
    $region27: #{tpu_custom_call.1} parent=1 // pred_check_branch
      %432 = sbr.rel (0) target = $region29
    $region28: #{tpu_custom_call.1} parent=1 // pred_region
      %434 = dma.done [#allocation3], 4096
    $region29: #{tpu_custom_call.1} parent=1 // pred_fallthru
      _
    %435 = vsyncpa [#allocation3], 1

</llo_original>
